<compile_context>
chip_gen: v5e
topology: v5e:2x2
jax: 0.10.0
libtpu: 0.0.40
codegen_flags: <defaults>
</compile_context>

<pallas_src>
import math
import numpy as np
import jax
import jax.numpy as jnp
from jax.experimental import pallas as pl
from jax.experimental.pallas import tpu as pltpu

# ---- config (small, consistent with the module) ----
B = 2
T = 8                               # seq len == max_seq_len
EMB = 32
N_Q_HEADS = 4
N_KV_HEADS = 2
HEAD_DIM = EMB // N_Q_HEADS         # 8
HALF = HEAD_DIM // 2                # 4
N_REP = N_Q_HEADS // N_KV_HEADS     # 2
KV_WIDTH = N_KV_HEADS * HEAD_DIM    # 16
INTER = 64                          # intermediate_size
EPS = 1e-6
ROPE_THETA = 10000.0
DTYPE = jnp.float32
SCALE = 1.0 / math.sqrt(HEAD_DIM)
BT = B * T

# column offsets into the fused QKV matmul result (width 112)
Q_OFF = 0
QR_OFF = EMB
K_OFF = 2 * EMB
KR_OFF = 2 * EMB + KV_WIDTH
V_OFF = 2 * EMB + 2 * KV_WIDTH
QKV_W = 2 * EMB + 3 * KV_WIDTH      # 112


def transformer_block_kernel(x_ref, wqkv_ref, wo_ref, wgu_ref, wd_ref,
                             normw_ref, cossin_ref, bias_ref, out_ref):
    x = x_ref[...]                              # (BT, EMB)  batch folded into rows
    cos = cossin_ref[:, :EMB]                   # (BT, EMB)  tiled per head & per batch row
    sin = cossin_ref[:, EMB:]
    bias = bias_ref[...]                        # (BT, BT)   block-diag causal additive bias

    w_in = normw_ref[0:1, :]                    # (1, EMB)
    w_attn = normw_ref[1:2, :]

    def rmsnorm(v, w):
        ms = jnp.mean(v * v, axis=-1, keepdims=True)
        return v * jax.lax.rsqrt(ms + EPS) * w

    # ---------------- attention branch ----------------
    h = rmsnorm(x, w_in)                                                 # (BT, EMB)

    # one fused projection: q | q_rot | k | k_rot | v   (SCALE folded into q / q_rot)
    qkv = jnp.dot(h, wqkv_ref[...], preferred_element_type=jnp.float32)  # (BT, 112)
    q = qkv[:, Q_OFF:Q_OFF + EMB]
    q_rot = qkv[:, QR_OFF:QR_OFF + EMB]
    k = qkv[:, K_OFF:K_OFF + KV_WIDTH]
    k_rot = qkv[:, KR_OFF:KR_OFF + KV_WIDTH]
    v = qkv[:, V_OFF:V_OFF + KV_WIDTH]

    # RoPE: rotate_half was applied to the weights host-side -> pure VPU mul-add here.
    q = q * cos + q_rot * sin
    k = k * cos[:, :KV_WIDTH] + k_rot * sin[:, :KV_WIDTH]

    wo = wo_ref[...]                                                     # (EMB, EMB)
    attn = None
    for hq in range(N_Q_HEADS):
        hkv = hq // N_REP                                                # GQA shared kv head
        q_h = q[:, hq * HEAD_DIM:(hq + 1) * HEAD_DIM]                    # (BT, hd)
        k_h = k[:, hkv * HEAD_DIM:(hkv + 1) * HEAD_DIM]
        v_h = v[:, hkv * HEAD_DIM:(hkv + 1) * HEAD_DIM]

        # q_h @ k_h^T without an explicit transpose; causal+batch mask is an additive bias
        s = jax.lax.dot_general(q_h, k_h, (((1,), (1,)), ((), ())),
                                preferred_element_type=jnp.float32) + bias
        m = jnp.max(s, axis=-1, keepdims=True)
        p = jnp.exp(s - m)
        inv = pl.reciprocal(jnp.sum(p, axis=-1, keepdims=True), approx=True)
        p = p * inv
        y_h = jnp.dot(p, v_h, preferred_element_type=jnp.float32)        # (BT, hd)
        # accumulate through the matching slice of the output projection (no concat)
        contrib = jnp.dot(y_h, wo[hq * HEAD_DIM:(hq + 1) * HEAD_DIM, :],
                          preferred_element_type=jnp.float32)
        attn = contrib if attn is None else attn + contrib

    x = x + attn                                                         # resid_dropout = id

    # ---------------- feed-forward branch ----------------
    h2 = rmsnorm(x, w_attn)
    gu = jnp.dot(h2, wgu_ref[...], preferred_element_type=jnp.float32)   # (BT, 2*INTER)
    g = gu[:, :INTER]
    u = gu[:, INTER:]
    ff = jnp.dot(g * jax.nn.sigmoid(g) * u, wd_ref[...],                 # SiLU(g) * u
                 preferred_element_type=jnp.float32)

    out_ref[...] = (x + ff).astype(out_ref.dtype)


def transformer_block(x, kp):
    Bsz, Tlen, C = x.shape
    x2 = x.reshape(Bsz * Tlen, C)                 # fold batch into rows -> single grid step
    n_in = 8
    out = pl.pallas_call(
        transformer_block_kernel,
        out_shape=jax.ShapeDtypeStruct((Bsz * Tlen, C), x.dtype),
        in_specs=[pl.BlockSpec(memory_space=pltpu.MemorySpace.VMEM)] * n_in,
        out_specs=pl.BlockSpec(memory_space=pltpu.MemorySpace.VMEM),
    )(x2, kp["wqkv"], kp["wo"], kp["wgu"], kp["wd"],
      kp["normw"], kp["cossin"], kp["bias"])
    return out.reshape(Bsz, Tlen, C)


# ---------------- host-side parameter / RoPE / mask setup (plain JAX + numpy) ----------------
def rotary_cos_sin(seq_len, dim, theta=ROPE_THETA):
    inv_freq = 1.0 / (theta ** (jnp.arange(0, dim, 2, dtype=jnp.float32) / dim))
    t = jnp.arange(seq_len, dtype=jnp.float32)
    freqs = jnp.outer(t, inv_freq)                              # (T, dim/2)
    emb = jnp.concatenate([freqs, freqs], axis=-1)              # (T, dim)
    return jnp.cos(emb).astype(DTYPE), jnp.sin(emb).astype(DTYPE)


def _rot_half_matrix(n_heads):
    """Right-multiply matrix R with (x @ R) == per-head rotate_half(x) = [-hi | lo]."""
    dim = n_heads * HEAD_DIM
    R = np.zeros((dim, dim), np.float32)
    for h in range(n_heads):
        base = h * HEAD_DIM
        for j in range(HALF):
            R[base + HALF + j, base + j] = -1.0   # out[:, j]      = -in[:, HALF+j]
            R[base + j, base + HALF + j] = 1.0    # out[:, HALF+j] =  in[:, j]
    return jnp.asarray(R)


def prepare_kernel_inputs(params, cos, sin):
    Rq = _rot_half_matrix(N_Q_HEADS)
    Rk = _rot_half_matrix(N_KV_HEADS)
    wq_s = params["wq"] * SCALE                   # fold 1/sqrt(head_dim) (once) into q path
    wqkv = jnp.concatenate(
        [wq_s, wq_s @ Rq, params["wk"], params["wk"] @ Rk, params["wv"]], axis=1)
    assert wqkv.shape == (EMB, QKV_W)
    wgu = jnp.concatenate([params["wg"], params["wu"]], axis=1)          # (EMB, 2*INTER)
    normw = jnp.concatenate([params["w_in"], params["w_attn"]], axis=0)  # (2, EMB)

    cos_bt = jnp.tile(jnp.tile(cos, (1, N_Q_HEADS)), (B, 1))             # (BT, EMB)
    sin_bt = jnp.tile(jnp.tile(sin, (1, N_Q_HEADS)), (B, 1))
    cossin = jnp.concatenate([cos_bt, sin_bt], axis=1)                   # (BT, 2*EMB)

    # block-diagonal causal additive bias over folded-batch rows
    bias = np.full((BT, BT), -1e30, np.float32)
    for b in range(B):
        for i in range(T):
            bias[b * T + i, b * T: b * T + i + 1] = 0.0

    return {"wqkv": wqkv, "wo": params["wo"], "wgu": wgu, "wd": params["wd"],
            "normw": normw, "cossin": cossin, "bias": jnp.asarray(bias)}


def init_params(key):
    ks = jax.random.split(key, 7)
    s = 0.02
    return {
        "wq": jax.random.normal(ks[0], (EMB, EMB), DTYPE) * s,
        "wk": jax.random.normal(ks[1], (EMB, KV_WIDTH), DTYPE) * s,
        "wv": jax.random.normal(ks[2], (EMB, KV_WIDTH), DTYPE) * s,
        "wo": jax.random.normal(ks[3], (EMB, EMB), DTYPE) * s,
        "wg": jax.random.normal(ks[4], (EMB, INTER), DTYPE) * s,
        "wu": jax.random.normal(ks[5], (EMB, INTER), DTYPE) * s,
        "wd": jax.random.normal(ks[6], (INTER, EMB), DTYPE) * s,
        "w_in": jnp.ones((1, EMB), DTYPE),        # RMSNorm weights init to ones (as in torch)
        "w_attn": jnp.ones((1, EMB), DTYPE),
    }


def reference(x, p, cos, sin):
    # pure-JAX mirror of the PyTorch forward (eval mode, dropout = identity)
    Bsz, Tlen, C = x.shape

    def rms(v, w):
        return v * jax.lax.rsqrt(jnp.mean(v * v, -1, keepdims=True) + EPS) * w

    h = rms(x, p["w_in"][0])
    q = (h @ p["wq"]).reshape(Bsz, Tlen, N_Q_HEADS, HEAD_DIM).transpose(0, 2, 1, 3)
    k = (h @ p["wk"]).reshape(Bsz, Tlen, N_KV_HEADS, HEAD_DIM).transpose(0, 2, 1, 3)
    v = (h @ p["wv"]).reshape(Bsz, Tlen, N_KV_HEADS, HEAD_DIM).transpose(0, 2, 1, 3)

    def rot_half(t):
        return jnp.concatenate([-t[..., HALF:], t[..., :HALF]], -1)

    q = q * cos + rot_half(q) * sin
    k = k * cos + rot_half(k) * sin
    k = jnp.repeat(k, N_REP, axis=1)
    v = jnp.repeat(v, N_REP, axis=1)
    s = jnp.einsum("bhqd,bhkd->bhqk", q, k) / math.sqrt(HEAD_DIM)
    mask = jnp.tril(jnp.ones((Tlen, Tlen), bool))
    s = jnp.where(mask, s, -jnp.inf)
    att = jax.nn.softmax(s, -1)
    y = jnp.einsum("bhqk,bhkd->bhqd", att, v).transpose(0, 2, 1, 3).reshape(Bsz, Tlen, C)
    x = x + y @ p["wo"]
    h2 = rms(x, p["w_attn"][0])
    return x + (jax.nn.silu(h2 @ p["wg"]) * (h2 @ p["wu"])) @ p["wd"]


if __name__ == "__main__":
    key = jax.random.PRNGKey(0)
    k_x, k_p = jax.random.split(key)
    x = jax.random.normal(k_x, (B, T, EMB), DTYPE)
    params = init_params(k_p)
    cos, sin = rotary_cos_sin(T, HEAD_DIM)
    kp = prepare_kernel_inputs(params, cos, sin)

    out = jax.block_until_ready(transformer_block(x, kp))
    ref = jax.block_until_ready(reference(x, params, cos, sin))
    # 1e-4 (vs previous 1e-2): tight enough to catch refactor regressions while leaving
    # headroom for the approx EUP reciprocal in the softmax denominator.
    np.testing.assert_allclose(np.asarray(out), np.asarray(ref), atol=1e-4, rtol=1e-4)

    print("KERNEL_OK")
</pallas_src>

<mosaic_0001>
module attributes {stable_mosaic.version = 11 : i64} {
  func.func @transformer_block_kernel(%arg0: memref<16x32xf32, #tpu.memory_space<vmem>>, %arg1: memref<32x112xf32, #tpu.memory_space<vmem>>, %arg2: memref<32x32xf32, #tpu.memory_space<vmem>>, %arg3: memref<32x128xf32, #tpu.memory_space<vmem>>, %arg4: memref<64x32xf32, #tpu.memory_space<vmem>>, %arg5: memref<2x32xf32, #tpu.memory_space<vmem>>, %arg6: memref<16x64xf32, #tpu.memory_space<vmem>>, %arg7: memref<16x16xf32, #tpu.memory_space<vmem>>, %arg8: memref<16x32xf32, #tpu.memory_space<vmem>>) attributes {dimension_semantics = [], scalar_prefetch = 0 : i64, scratch_operands = 0 : i64, tpu.core_type = #tpu.core_type<tc>} {
    %c0 = arith.constant 0 : index
    %c0_0 = arith.constant 0 : index
    %0 = vector.load %arg0[%c0, %c0_0] : memref<16x32xf32, #tpu.memory_space<vmem>>, vector<16x32xf32>
    %c0_1 = arith.constant 0 : index
    %c0_2 = arith.constant 0 : index
    %1 = vector.load %arg6[%c0_1, %c0_2] : memref<16x64xf32, #tpu.memory_space<vmem>>, vector<16x32xf32>
    %c0_3 = arith.constant 0 : index
    %c32 = arith.constant 32 : index
    %2 = vector.load %arg6[%c0_3, %c32] : memref<16x64xf32, #tpu.memory_space<vmem>>, vector<16x32xf32>
    %c0_4 = arith.constant 0 : index
    %c0_5 = arith.constant 0 : index
    %3 = vector.load %arg7[%c0_4, %c0_5] : memref<16x16xf32, #tpu.memory_space<vmem>>, vector<16x16xf32>
    %c0_6 = arith.constant 0 : index
    %c0_7 = arith.constant 0 : index
    %4 = vector.load %arg5[%c0_6, %c0_7] : memref<2x32xf32, #tpu.memory_space<vmem>>, vector<1x32xf32>
    %c1 = arith.constant 1 : index
    %c0_8 = arith.constant 0 : index
    %5 = vector.load %arg5[%c1, %c0_8] : memref<2x32xf32, #tpu.memory_space<vmem>>, vector<1x32xf32>
    %6 = arith.mulf %0, %0 : vector<16x32xf32>
    %cst = arith.constant dense<0.000000e+00> : vector<16xf32>
    %7 = vector.multi_reduction <add>, %6, %cst [1] : vector<16x32xf32> to vector<16xf32>
    %8 = vector.shape_cast %7 : vector<16xf32> to vector<16x1xf32>
    %cst_9 = arith.constant 3.200000e+01 : f32
    %9 = vector.broadcast %cst_9 : f32 to vector<16x1xf32>
    %10 = arith.divf %8, %9 : vector<16x1xf32>
    %cst_10 = arith.constant 9.99999997E-7 : f32
    %11 = vector.broadcast %cst_10 : f32 to vector<16x1xf32>
    %12 = arith.addf %10, %11 : vector<16x1xf32>
    %13 = math.rsqrt %12 : vector<16x1xf32>
    %14 = vector.broadcast %13 : vector<16x1xf32> to vector<16x32xf32>
    %15 = arith.mulf %0, %14 : vector<16x32xf32>
    %16 = vector.broadcast %4 : vector<1x32xf32> to vector<16x32xf32>
    %17 = arith.mulf %15, %16 : vector<16x32xf32>
    %c0_11 = arith.constant 0 : index
    %c0_12 = arith.constant 0 : index
    %18 = vector.load %arg1[%c0_11, %c0_12] : memref<32x112xf32, #tpu.memory_space<vmem>>, vector<32x112xf32>
    %cst_13 = arith.constant dense<0.000000e+00> : vector<16x112xf32>
    %19 = tpu.matmul %17, %18, %cst_13 {dimension_numbers = #tpu.dot_dimension_numbers<[1], [0], [0], [1], [0, 0, 1, 1], [], []>} : vector<16x32xf32>, vector<32x112xf32>, vector<16x112xf32> -> vector<16x112xf32>
    %20 = vector.extract_strided_slice %19 {offsets = [0, 0], sizes = [16, 32], strides = [1, 1]} : vector<16x112xf32> to vector<16x32xf32>
    %21 = vector.extract_strided_slice %19 {offsets = [0, 32], sizes = [16, 32], strides = [1, 1]} : vector<16x112xf32> to vector<16x32xf32>
    %22 = vector.extract_strided_slice %19 {offsets = [0, 64], sizes = [16, 16], strides = [1, 1]} : vector<16x112xf32> to vector<16x16xf32>
    %23 = vector.extract_strided_slice %19 {offsets = [0, 80], sizes = [16, 16], strides = [1, 1]} : vector<16x112xf32> to vector<16x16xf32>
    %24 = vector.extract_strided_slice %19 {offsets = [0, 96], sizes = [16, 16], strides = [1, 1]} : vector<16x112xf32> to vector<16x16xf32>
    %25 = arith.mulf %20, %1 : vector<16x32xf32>
    %26 = arith.mulf %21, %2 : vector<16x32xf32>
    %27 = arith.addf %25, %26 : vector<16x32xf32>
    %28 = vector.extract_strided_slice %1 {offsets = [0, 0], sizes = [16, 16], strides = [1, 1]} : vector<16x32xf32> to vector<16x16xf32>
    %29 = arith.mulf %22, %28 : vector<16x16xf32>
    %30 = vector.extract_strided_slice %2 {offsets = [0, 0], sizes = [16, 16], strides = [1, 1]} : vector<16x32xf32> to vector<16x16xf32>
    %31 = arith.mulf %23, %30 : vector<16x16xf32>
    %32 = arith.addf %29, %31 : vector<16x16xf32>
    %c0_14 = arith.constant 0 : index
    %c0_15 = arith.constant 0 : index
    %33 = vector.load %arg2[%c0_14, %c0_15] : memref<32x32xf32, #tpu.memory_space<vmem>>, vector<32x32xf32>
    %34 = vector.extract_strided_slice %27 {offsets = [0, 0], sizes = [16, 8], strides = [1, 1]} : vector<16x32xf32> to vector<16x8xf32>
    %35 = vector.extract_strided_slice %32 {offsets = [0, 0], sizes = [16, 8], strides = [1, 1]} : vector<16x16xf32> to vector<16x8xf32>
    %36 = vector.extract_strided_slice %24 {offsets = [0, 0], sizes = [16, 8], strides = [1, 1]} : vector<16x16xf32> to vector<16x8xf32>
    %cst_16 = arith.constant dense<0.000000e+00> : vector<16x16xf32>
    %37 = tpu.matmul %34, %35, %cst_16 {dimension_numbers = #tpu.dot_dimension_numbers<[1], [1], [0], [0], [0, 0, 1, 0], [], []>} : vector<16x8xf32>, vector<16x8xf32>, vector<16x16xf32> -> vector<16x16xf32>
    %38 = arith.addf %37, %3 : vector<16x16xf32>
    %cst_17 = arith.constant dense<0xFF800000> : vector<16xf32>
    %39 = vector.multi_reduction <maximumf>, %38, %cst_17 [1] : vector<16x16xf32> to vector<16xf32>
    %40 = vector.shape_cast %39 : vector<16xf32> to vector<16x1xf32>
    %41 = vector.broadcast %40 : vector<16x1xf32> to vector<16x16xf32>
    %42 = arith.subf %38, %41 : vector<16x16xf32>
    %43 = math.exp %42 : vector<16x16xf32>
    %cst_18 = arith.constant dense<0.000000e+00> : vector<16xf32>
    %44 = vector.multi_reduction <add>, %43, %cst_18 [1] : vector<16x16xf32> to vector<16xf32>
    %45 = vector.shape_cast %44 : vector<16xf32> to vector<16x1xf32>
    %46 = tpu.reciprocal %45 {approx = true} : vector<16x1xf32> -> vector<16x1xf32>
    %47 = vector.broadcast %46 : vector<16x1xf32> to vector<16x16xf32>
    %48 = arith.mulf %43, %47 : vector<16x16xf32>
    %cst_19 = arith.constant dense<0.000000e+00> : vector<16x8xf32>
    %49 = tpu.matmul %48, %36, %cst_19 {dimension_numbers = #tpu.dot_dimension_numbers<[1], [0], [0], [1], [0, 0, 1, 1], [], []>} : vector<16x16xf32>, vector<16x8xf32>, vector<16x8xf32> -> vector<16x8xf32>
    %50 = vector.extract_strided_slice %33 {offsets = [0, 0], sizes = [8, 32], strides = [1, 1]} : vector<32x32xf32> to vector<8x32xf32>
    %cst_20 = arith.constant dense<0.000000e+00> : vector<16x32xf32>
    %51 = tpu.matmul %49, %50, %cst_20 {dimension_numbers = #tpu.dot_dimension_numbers<[1], [0], [0], [1], [0, 0, 1, 1], [], []>} : vector<16x8xf32>, vector<8x32xf32>, vector<16x32xf32> -> vector<16x32xf32>
    %52 = vector.extract_strided_slice %27 {offsets = [0, 8], sizes = [16, 8], strides = [1, 1]} : vector<16x32xf32> to vector<16x8xf32>
    %53 = vector.extract_strided_slice %32 {offsets = [0, 0], sizes = [16, 8], strides = [1, 1]} : vector<16x16xf32> to vector<16x8xf32>
    %54 = vector.extract_strided_slice %24 {offsets = [0, 0], sizes = [16, 8], strides = [1, 1]} : vector<16x16xf32> to vector<16x8xf32>
    %cst_21 = arith.constant dense<0.000000e+00> : vector<16x16xf32>
    %55 = tpu.matmul %52, %53, %cst_21 {dimension_numbers = #tpu.dot_dimension_numbers<[1], [1], [0], [0], [0, 0, 1, 0], [], []>} : vector<16x8xf32>, vector<16x8xf32>, vector<16x16xf32> -> vector<16x16xf32>
    %56 = arith.addf %55, %3 : vector<16x16xf32>
    %cst_22 = arith.constant dense<0xFF800000> : vector<16xf32>
    %57 = vector.multi_reduction <maximumf>, %56, %cst_22 [1] : vector<16x16xf32> to vector<16xf32>
    %58 = vector.shape_cast %57 : vector<16xf32> to vector<16x1xf32>
    %59 = vector.broadcast %58 : vector<16x1xf32> to vector<16x16xf32>
    %60 = arith.subf %56, %59 : vector<16x16xf32>
    %61 = math.exp %60 : vector<16x16xf32>
    %cst_23 = arith.constant dense<0.000000e+00> : vector<16xf32>
    %62 = vector.multi_reduction <add>, %61, %cst_23 [1] : vector<16x16xf32> to vector<16xf32>
    %63 = vector.shape_cast %62 : vector<16xf32> to vector<16x1xf32>
    %64 = tpu.reciprocal %63 {approx = true} : vector<16x1xf32> -> vector<16x1xf32>
    %65 = vector.broadcast %64 : vector<16x1xf32> to vector<16x16xf32>
    %66 = arith.mulf %61, %65 : vector<16x16xf32>
    %cst_24 = arith.constant dense<0.000000e+00> : vector<16x8xf32>
    %67 = tpu.matmul %66, %54, %cst_24 {dimension_numbers = #tpu.dot_dimension_numbers<[1], [0], [0], [1], [0, 0, 1, 1], [], []>} : vector<16x16xf32>, vector<16x8xf32>, vector<16x8xf32> -> vector<16x8xf32>
    %68 = vector.extract_strided_slice %33 {offsets = [8, 0], sizes = [8, 32], strides = [1, 1]} : vector<32x32xf32> to vector<8x32xf32>
    %cst_25 = arith.constant dense<0.000000e+00> : vector<16x32xf32>
    %69 = tpu.matmul %67, %68, %cst_25 {dimension_numbers = #tpu.dot_dimension_numbers<[1], [0], [0], [1], [0, 0, 1, 1], [], []>} : vector<16x8xf32>, vector<8x32xf32>, vector<16x32xf32> -> vector<16x32xf32>
    %70 = arith.addf %51, %69 : vector<16x32xf32>
    %71 = vector.extract_strided_slice %27 {offsets = [0, 16], sizes = [16, 8], strides = [1, 1]} : vector<16x32xf32> to vector<16x8xf32>
    %72 = vector.extract_strided_slice %32 {offsets = [0, 8], sizes = [16, 8], strides = [1, 1]} : vector<16x16xf32> to vector<16x8xf32>
    %73 = vector.extract_strided_slice %24 {offsets = [0, 8], sizes = [16, 8], strides = [1, 1]} : vector<16x16xf32> to vector<16x8xf32>
    %cst_26 = arith.constant dense<0.000000e+00> : vector<16x16xf32>
    %74 = tpu.matmul %71, %72, %cst_26 {dimension_numbers = #tpu.dot_dimension_numbers<[1], [1], [0], [0], [0, 0, 1, 0], [], []>} : vector<16x8xf32>, vector<16x8xf32>, vector<16x16xf32> -> vector<16x16xf32>
    %75 = arith.addf %74, %3 : vector<16x16xf32>
    %cst_27 = arith.constant dense<0xFF800000> : vector<16xf32>
    %76 = vector.multi_reduction <maximumf>, %75, %cst_27 [1] : vector<16x16xf32> to vector<16xf32>
    %77 = vector.shape_cast %76 : vector<16xf32> to vector<16x1xf32>
    %78 = vector.broadcast %77 : vector<16x1xf32> to vector<16x16xf32>
    %79 = arith.subf %75, %78 : vector<16x16xf32>
    %80 = math.exp %79 : vector<16x16xf32>
    %cst_28 = arith.constant dense<0.000000e+00> : vector<16xf32>
    %81 = vector.multi_reduction <add>, %80, %cst_28 [1] : vector<16x16xf32> to vector<16xf32>
    %82 = vector.shape_cast %81 : vector<16xf32> to vector<16x1xf32>
    %83 = tpu.reciprocal %82 {approx = true} : vector<16x1xf32> -> vector<16x1xf32>
    %84 = vector.broadcast %83 : vector<16x1xf32> to vector<16x16xf32>
    %85 = arith.mulf %80, %84 : vector<16x16xf32>
    %cst_29 = arith.constant dense<0.000000e+00> : vector<16x8xf32>
    %86 = tpu.matmul %85, %73, %cst_29 {dimension_numbers = #tpu.dot_dimension_numbers<[1], [0], [0], [1], [0, 0, 1, 1], [], []>} : vector<16x16xf32>, vector<16x8xf32>, vector<16x8xf32> -> vector<16x8xf32>
    %87 = vector.extract_strided_slice %33 {offsets = [16, 0], sizes = [8, 32], strides = [1, 1]} : vector<32x32xf32> to vector<8x32xf32>
    %cst_30 = arith.constant dense<0.000000e+00> : vector<16x32xf32>
    %88 = tpu.matmul %86, %87, %cst_30 {dimension_numbers = #tpu.dot_dimension_numbers<[1], [0], [0], [1], [0, 0, 1, 1], [], []>} : vector<16x8xf32>, vector<8x32xf32>, vector<16x32xf32> -> vector<16x32xf32>
    %89 = arith.addf %70, %88 : vector<16x32xf32>
    %90 = vector.extract_strided_slice %27 {offsets = [0, 24], sizes = [16, 8], strides = [1, 1]} : vector<16x32xf32> to vector<16x8xf32>
    %91 = vector.extract_strided_slice %32 {offsets = [0, 8], sizes = [16, 8], strides = [1, 1]} : vector<16x16xf32> to vector<16x8xf32>
    %92 = vector.extract_strided_slice %24 {offsets = [0, 8], sizes = [16, 8], strides = [1, 1]} : vector<16x16xf32> to vector<16x8xf32>
    %cst_31 = arith.constant dense<0.000000e+00> : vector<16x16xf32>
    %93 = tpu.matmul %90, %91, %cst_31 {dimension_numbers = #tpu.dot_dimension_numbers<[1], [1], [0], [0], [0, 0, 1, 0], [], []>} : vector<16x8xf32>, vector<16x8xf32>, vector<16x16xf32> -> vector<16x16xf32>
    %94 = arith.addf %93, %3 : vector<16x16xf32>
    %cst_32 = arith.constant dense<0xFF800000> : vector<16xf32>
    %95 = vector.multi_reduction <maximumf>, %94, %cst_32 [1] : vector<16x16xf32> to vector<16xf32>
    %96 = vector.shape_cast %95 : vector<16xf32> to vector<16x1xf32>
    %97 = vector.broadcast %96 : vector<16x1xf32> to vector<16x16xf32>
    %98 = arith.subf %94, %97 : vector<16x16xf32>
    %99 = math.exp %98 : vector<16x16xf32>
    %cst_33 = arith.constant dense<0.000000e+00> : vector<16xf32>
    %100 = vector.multi_reduction <add>, %99, %cst_33 [1] : vector<16x16xf32> to vector<16xf32>
    %101 = vector.shape_cast %100 : vector<16xf32> to vector<16x1xf32>
    %102 = tpu.reciprocal %101 {approx = true} : vector<16x1xf32> -> vector<16x1xf32>
    %103 = vector.broadcast %102 : vector<16x1xf32> to vector<16x16xf32>
    %104 = arith.mulf %99, %103 : vector<16x16xf32>
    %cst_34 = arith.constant dense<0.000000e+00> : vector<16x8xf32>
    %105 = tpu.matmul %104, %92, %cst_34 {dimension_numbers = #tpu.dot_dimension_numbers<[1], [0], [0], [1], [0, 0, 1, 1], [], []>} : vector<16x16xf32>, vector<16x8xf32>, vector<16x8xf32> -> vector<16x8xf32>
    %106 = vector.extract_strided_slice %33 {offsets = [24, 0], sizes = [8, 32], strides = [1, 1]} : vector<32x32xf32> to vector<8x32xf32>
    %cst_35 = arith.constant dense<0.000000e+00> : vector<16x32xf32>
    %107 = tpu.matmul %105, %106, %cst_35 {dimension_numbers = #tpu.dot_dimension_numbers<[1], [0], [0], [1], [0, 0, 1, 1], [], []>} : vector<16x8xf32>, vector<8x32xf32>, vector<16x32xf32> -> vector<16x32xf32>
    %108 = arith.addf %89, %107 : vector<16x32xf32>
    %109 = arith.addf %0, %108 : vector<16x32xf32>
    %110 = arith.mulf %109, %109 : vector<16x32xf32>
    %cst_36 = arith.constant dense<0.000000e+00> : vector<16xf32>
    %111 = vector.multi_reduction <add>, %110, %cst_36 [1] : vector<16x32xf32> to vector<16xf32>
    %112 = vector.shape_cast %111 : vector<16xf32> to vector<16x1xf32>
    %cst_37 = arith.constant 3.200000e+01 : f32
    %113 = vector.broadcast %cst_37 : f32 to vector<16x1xf32>
    %114 = arith.divf %112, %113 : vector<16x1xf32>
    %cst_38 = arith.constant 9.99999997E-7 : f32
    %115 = vector.broadcast %cst_38 : f32 to vector<16x1xf32>
    %116 = arith.addf %114, %115 : vector<16x1xf32>
    %117 = math.rsqrt %116 : vector<16x1xf32>
    %118 = vector.broadcast %117 : vector<16x1xf32> to vector<16x32xf32>
    %119 = arith.mulf %109, %118 : vector<16x32xf32>
    %120 = vector.broadcast %5 : vector<1x32xf32> to vector<16x32xf32>
    %121 = arith.mulf %119, %120 : vector<16x32xf32>
    %c0_39 = arith.constant 0 : index
    %c0_40 = arith.constant 0 : index
    %122 = vector.load %arg3[%c0_39, %c0_40] : memref<32x128xf32, #tpu.memory_space<vmem>>, vector<32x128xf32>
    %cst_41 = arith.constant dense<0.000000e+00> : vector<16x128xf32>
    %123 = tpu.matmul %121, %122, %cst_41 {dimension_numbers = #tpu.dot_dimension_numbers<[1], [0], [0], [1], [0, 0, 1, 1], [], []>} : vector<16x32xf32>, vector<32x128xf32>, vector<16x128xf32> -> vector<16x128xf32>
    %124 = vector.extract_strided_slice %123 {offsets = [0, 0], sizes = [16, 64], strides = [1, 1]} : vector<16x128xf32> to vector<16x64xf32>
    %125 = vector.extract_strided_slice %123 {offsets = [0, 64], sizes = [16, 64], strides = [1, 1]} : vector<16x128xf32> to vector<16x64xf32>
    %126 = arith.negf %124 : vector<16x64xf32>
    %127 = math.exp %126 : vector<16x64xf32>
    %cst_42 = arith.constant 1.000000e+00 : f32
    %128 = vector.broadcast %cst_42 : f32 to vector<16x64xf32>
    %129 = arith.addf %128, %127 : vector<16x64xf32>
    %130 = arith.divf %128, %129 : vector<16x64xf32>
    %131 = arith.mulf %124, %130 : vector<16x64xf32>
    %132 = arith.mulf %131, %125 : vector<16x64xf32>
    %c0_43 = arith.constant 0 : index
    %c0_44 = arith.constant 0 : index
    %133 = vector.load %arg4[%c0_43, %c0_44] : memref<64x32xf32, #tpu.memory_space<vmem>>, vector<64x32xf32>
    %cst_45 = arith.constant dense<0.000000e+00> : vector<16x32xf32>
    %134 = tpu.matmul %132, %133, %cst_45 {dimension_numbers = #tpu.dot_dimension_numbers<[1], [0], [0], [1], [0, 0, 1, 1], [], []>} : vector<16x64xf32>, vector<64x32xf32>, vector<16x32xf32> -> vector<16x32xf32>
    %135 = arith.addf %109, %134 : vector<16x32xf32>
    %c0_46 = arith.constant 0 : index
    %c0_47 = arith.constant 0 : index
    %136 = vector.load %arg8[%c0_46, %c0_47] : memref<16x32xf32, #tpu.memory_space<vmem>>, vector<16x32xf32>
    tpu.vector_store %arg8[%c0_46, %c0_47], %135 {strides = array<i32>} : memref<16x32xf32, #tpu.memory_space<vmem>>, vector<16x32xf32>,
    return
  }
}

</mosaic_0001>

<llo_original>
// kernel: tpu_custom_call.1
$region0: #{tpu_custom_call.1}
  #allocation0 [shape = 'u32[]', space=smem, size = 0x4, offset = 0x4, fixed_abs, tag = 'smem constant byte address 0x4 - core index']
  #allocation1 [shape = 'u32[72,128]{1,0:T(1,128)}', space=vmem, size = 0x9000, scoped, tag = 'internal scratch']
  %s0 = inlined_call_operand.hbm [shape: f32[16,32], index: 0, kind: input, shape index: {}]
  %s1 = inlined_call_operand.vmem [shape: f32[32,112], index: 1, kind: input, shape index: {}]
  %s2 = inlined_call_operand.vmem [shape: f32[32,32], index: 2, kind: input, shape index: {}]
  %s3 = inlined_call_operand.vmem [shape: f32[32,128], index: 3, kind: input, shape index: {}]
  %s4 = inlined_call_operand.vmem [shape: f32[64,32], index: 4, kind: input, shape index: {}]
  %s5 = inlined_call_operand.vmem [shape: f32[2,32], index: 5, kind: input, shape index: {}]
  %s6 = inlined_call_operand.hbm [shape: f32[16,64], index: 6, kind: input, shape index: {}]
  %s7 = inlined_call_operand.hbm [shape: f32[16,16], index: 7, kind: input, shape index: {}]
  %s8 = inlined_call_operand.hbm [shape: f32[16,32], index: 8, kind: output, shape index: {}]
  %s9 = sld [smem:[#allocation0]]
  $region54: #{tpu_custom_call.1} parent=0
    _
  %s11 = ssub.s32 1, %s9
  %s12 = scalar_select 0, %s11, %s9
  $region1: #{tpu_custom_call.1} parent=0
    #allocation2 [shape = 'u8[8192]{0}', space=vmem, size = 0x2000, scoped, tag = 'input window, operand 0, single buffered']
    #allocation3 [shape = 's32[1]{0}', space=sflag, size = 0x4, scoped, tag = 'scoped memory for tpu_custom_call.1']
    #allocation4 [shape = 's32[1]{0}', space=sflag, size = 0x4, scoped, tag = 'scoped memory for tpu_custom_call.1']
    #allocation5 [shape = 'u8[8192]{0}', space=vmem, size = 0x2000, scoped, tag = 'input window, operand 6, single buffered']
    #allocation6 [shape = 's32[1]{0}', space=sflag, size = 0x4, scoped, tag = 'scoped memory for tpu_custom_call.1']
    #allocation7 [shape = 'u8[8192]{0}', space=vmem, size = 0x2000, scoped, tag = 'input window, operand 7, single buffered']
    #allocation8 [shape = 'u8[8192]{0}', space=vmem, size = 0x2000, scoped, tag = 'output window, operand 0, single buffered']
    %13 = vsyncpa [#allocation3], 0
    %14 = vsyncpa [#allocation6], 0
    %15 = vsyncpa [#allocation4], 0
    // Predicated region
    $region2: #{tpu_custom_call.1} parent=1 // pred_check
      _
    $region3: #{tpu_custom_call.1} parent=1 // pred_check_branch
      %17 = sbr.rel (0) target = $region5
    $region4: #{tpu_custom_call.1} parent=1 // pred_region
      %19 = vsyncadd [#allocation3], 0
      %s20 = sshll.u32 %s0, 4
      %s21 = int_to_ptr.hbm [resolvable:$true] %s20
      %s22 = sshll.u32 [#allocation2], 4
      %s23 = int_to_ptr.vmem [resolvable:$true] %s22
      %28 = dma.hbm_to_vmem [thread:$0]  %s21, 256, %s23, [#allocation3], 128, 128, 8
    $region5: #{tpu_custom_call.1} parent=1 // pred_fallthru
      _
    // Predicated region
    $region6: #{tpu_custom_call.1} parent=1 // pred_check
      _
    $region7: #{tpu_custom_call.1} parent=1 // pred_check_branch
      %30 = sbr.rel (0) target = $region9
    $region8: #{tpu_custom_call.1} parent=1 // pred_region
      _
    $region9: #{tpu_custom_call.1} parent=1 // pred_fallthru
      _
    // Predicated region
    $region10: #{tpu_custom_call.1} parent=1 // pred_check
      _
    $region11: #{tpu_custom_call.1} parent=1 // pred_check_branch
      %32 = sbr.rel (0) target = $region13
    $region12: #{tpu_custom_call.1} parent=1 // pred_region
      _
    $region13: #{tpu_custom_call.1} parent=1 // pred_fallthru
      _
    // Predicated region
    $region14: #{tpu_custom_call.1} parent=1 // pred_check
      _
    $region15: #{tpu_custom_call.1} parent=1 // pred_check_branch
      %34 = sbr.rel (0) target = $region17
    $region16: #{tpu_custom_call.1} parent=1 // pred_region
      _
    $region17: #{tpu_custom_call.1} parent=1 // pred_fallthru
      _
    // Predicated region
    $region18: #{tpu_custom_call.1} parent=1 // pred_check
      _
    $region19: #{tpu_custom_call.1} parent=1 // pred_check_branch
      %36 = sbr.rel (0) target = $region21
    $region20: #{tpu_custom_call.1} parent=1 // pred_region
      _
    $region21: #{tpu_custom_call.1} parent=1 // pred_fallthru
      _
    // Predicated region
    $region22: #{tpu_custom_call.1} parent=1 // pred_check
      _
    $region23: #{tpu_custom_call.1} parent=1 // pred_check_branch
      %38 = sbr.rel (0) target = $region25
    $region24: #{tpu_custom_call.1} parent=1 // pred_region
      _
    $region25: #{tpu_custom_call.1} parent=1 // pred_fallthru
      _
    // Predicated region
    $region26: #{tpu_custom_call.1} parent=1 // pred_check
      _
    $region27: #{tpu_custom_call.1} parent=1 // pred_check_branch
      %40 = sbr.rel (0) target = $region29
    $region28: #{tpu_custom_call.1} parent=1 // pred_region
      %42 = vsyncadd [#allocation6], 0
      %s43 = sshll.u32 %s6, 4
      %s44 = int_to_ptr.hbm [resolvable:$true] %s43
      %s45 = sshll.u32 [#allocation5], 4
      %s46 = int_to_ptr.vmem [resolvable:$true] %s45
      %51 = dma.hbm_to_vmem [thread:$0]  %s44, 256, %s46, [#allocation6], 128, 128, 8
    $region29: #{tpu_custom_call.1} parent=1 // pred_fallthru
      _
    // Predicated region
    $region30: #{tpu_custom_call.1} parent=1 // pred_check
      _
    $region31: #{tpu_custom_call.1} parent=1 // pred_check_branch
      %53 = sbr.rel (0) target = $region33
    $region32: #{tpu_custom_call.1} parent=1 // pred_region
      %55 = vsyncadd [#allocation6], 0
      %s56 = sshll.u32 %s7, 4
      %s57 = int_to_ptr.hbm [resolvable:$true] %s56
      %s58 = sshll.u32 [#allocation7], 4
      %s59 = int_to_ptr.vmem [resolvable:$true] %s58
      %64 = dma.hbm_to_vmem [thread:$0]  %s57, 256, %s59, [#allocation6], 128, 128, 8
    $region33: #{tpu_custom_call.1} parent=1 // pred_fallthru
      _
    // Predicated region
    $region34: #{tpu_custom_call.1} parent=1 // pred_check
      _
    $region35: #{tpu_custom_call.1} parent=1 // pred_check_branch
      %66 = sbr.rel (0) target = $region37
    $region36: #{tpu_custom_call.1} parent=1 // pred_region
      %68 = dma.done [#allocation3], 256
    $region37: #{tpu_custom_call.1} parent=1 // pred_fallthru
      _
    // Predicated region
    $region38: #{tpu_custom_call.1} parent=1 // pred_check
      _
    $region39: #{tpu_custom_call.1} parent=1 // pred_check_branch
      %70 = sbr.rel (0) target = $region41
    $region40: #{tpu_custom_call.1} parent=1 // pred_region
      %72 = dma.done [#allocation6], 256
    $region41: #{tpu_custom_call.1} parent=1 // pred_fallthru
      _
    // Predicated region
    $region42: #{tpu_custom_call.1} parent=1 // pred_check
      _
    $region43: #{tpu_custom_call.1} parent=1 // pred_check_branch
      %74 = sbr.rel (0) target = $region45
    $region44: #{tpu_custom_call.1} parent=1 // pred_region
      %76 = dma.done [#allocation6], 256
    $region45: #{tpu_custom_call.1} parent=1 // pred_fallthru
      _
    %v77 = vld [vmem:[#allocation2] sm:$0xff]
    %v78 = vld [vmem:[#allocation2 + $0x8] sm:$0xff]
    %v79 = vld [vmem:[#allocation5] sm:$0xff]
    %v80 = vld [vmem:[#allocation5 + $0x8] sm:$0xff]
    %v81 = vld [vmem:[#allocation7] sm:$0xff]
    %v82 = vld [vmem:[#allocation7 + $0x8] sm:$0xff]
    %v83 = vld [vmem:[%s5] sm:$0x1]
    %v84 = vld [vmem:[%s5 + $0x1] sm:$0x1]
    %v85 = vmul.f32 %v77, %v77
    %v86 = vmul.f32 %v78, %v78
    %vm87 = vcmask 261120
    %v88 = vsel %vm87, %v85, 0.0
    %89 = vadd.xlane.f32.xlu0 %v88
    %v90 = vpop.xlane.xlu0 %89
    %v91 = vsel %vm87, %v86, 0.0
    %92 = vadd.xlane.f32.xlu0 %v91
    %v93 = vpop.xlane.xlu0 %92
    %v94 = vrcp.pop 32.0
    %v95 = vmul.f32 32.0, %v94
    %v96 = vsub.f32 1.0, %v95
    %v97 = vmul.f32 %v94, %v96
    %v98 = vadd.f32 %v94, %v97
    %vm99 = vweird.f32 %v94
    %v100 = vsel %vm99, %v94, %v98
    %v101 = vmul.f32 %v90, %v100
    %v102 = vmul.f32 %v93, %v100
    %v103 = vadd.f32 %v101, 1e-06
    %v104 = vadd.f32 %v102, 1e-06
    %v105 = vrsqrt.pop %v103
    %v106 = vmul.f32 %v105, %v103
    %v107 = vmul.f32 %v106, %v105
    %v108 = vmul.f32 0.5, %v107
    %v109 = vsub.f32 1.5, %v108
    %v110 = vmul.f32 %v105, %v109
    %vm111 = vweird.f32 %v103
    %vm112 = vweird.f32 %v105
    %vm113 = vmor %vm111, %vm112
    %v114 = vsel %vm113, %v105, %v110
    %v115 = vrsqrt.pop %v104
    %v116 = vmul.f32 %v115, %v104
    %v117 = vmul.f32 %v116, %v115
    %v118 = vmul.f32 0.5, %v117
    %v119 = vsub.f32 1.5, %v118
    %v120 = vmul.f32 %v115, %v119
    %vm121 = vweird.f32 %v104
    %vm122 = vweird.f32 %v115
    %vm123 = vmor %vm121, %vm122
    %v124 = vsel %vm123, %v115, %v120
    %v125 = vmul.f32 %v77, %v114
    %v126 = vmul.f32 %v78, %v124
    %v127 = vperm.slane %v83, 0
    %v128 = vmul.f32 %v125, %v127
    %v129 = vmul.f32 %v126, %v127
    %v130 = vld [vmem:[%s1] sm:$0xff]
    %v131 = vld [vmem:[%s1 + $0x8] sm:$0xff]
    %v132 = vld [vmem:[%s1 + $0x10] sm:$0xff]
    %v133 = vld [vmem:[%s1 + $0x18] sm:$0xff]
    %v135 = vsel %vm87, %v128, 0
    %v138 = vsel %vm87, %v129, 0
    %140 = vmatpush.msra.mxu0 0.0
    %141 = vmatpush.msra.mxu0 0.0
    %142 = vmatpush.msra.mxu0 0.0
    %143 = vmatpush.msra.mxu0 0.0
    %144 = vmatpush.msra.mxu0 0.0
    %145 = vmatpush.msra.mxu0 0.0
    %146 = vmatpush.msra.mxu0 0.0
    %147 = vmatpush.msra.mxu0 0.0
    %148 = vmatpush.msra.mxu0 0.0
    %149 = vmatpush.msra.mxu0 0.0
    %150 = vmatpush.msra.mxu0 0.0
    %151 = vmatpush.msra.mxu0 0.0
    %152 = vmatpush.msra.mxu0 %v133
    %153 = vmatpush.msra.mxu0 %v132
    %154 = vmatpush.msra.mxu0 %v131
    %155 = vmatpush.msra.mxu0 %v130
    %156 = vmatmul.f32.gmra.mxu0 %v135
    %v157 = vpop.f32.mrf.mxu0
    %v158 = vadd.f32 0.0, %v157
    %159 = vmatmul.f32.gmra.mxu0 %v138
    %v160 = vpop.f32.mrf.mxu0
    %v161 = vadd.f32 0.0, %v160
    %162 = vdwg.mxu0
    %v163 = vmul.f32 %v158, %v79
    %v164 = vmul.f32 %v161, %v80
    %167 = vrot.lane.b32.xlu0 %v163, 96
    %v168 = vpop.permute.xlu0 %167
    %169 = vrot.lane.b32.xlu0 %v164, 96
    %v170 = vpop.permute.xlu0 %169
    %v173 = vadd.f32 %v163, %v168
    %v174 = vadd.f32 %v164, %v170
    %177 = vrot.lane.b32.xlu0 %v79, 64
    %v178 = vpop.permute.xlu0 %177
    %179 = vrot.lane.b32.xlu0 %v80, 64
    %v180 = vpop.permute.xlu0 %179
    %v183 = vmul.f32 %v158, %v178
    %v184 = vmul.f32 %v161, %v180
    %185 = vrot.lane.b32.xlu0 %v79, 48
    %v186 = vpop.permute.xlu0 %185
    %187 = vrot.lane.b32.xlu0 %v80, 48
    %v188 = vpop.permute.xlu0 %187
    %v191 = vmul.f32 %v158, %v186
    %v192 = vmul.f32 %v161, %v188
    %195 = vrot.lane.b32.xlu0 %v191, 112
    %v196 = vpop.permute.xlu0 %195
    %197 = vrot.lane.b32.xlu0 %v192, 112
    %v198 = vpop.permute.xlu0 %197
    %v201 = vadd.f32 %v183, %v196
    %v202 = vadd.f32 %v184, %v198
    %v203 = vld [vmem:[%s2] sm:$0xff]
    %v204 = vld [vmem:[%s2 + $0x8] sm:$0xff]
    %v205 = vld [vmem:[%s2 + $0x10] sm:$0xff]
    %v206 = vld [vmem:[%s2 + $0x18] sm:$0xff]
    %209 = vrot.lane.b32.xlu0 %v201, 64
    %v210 = vpop.permute.xlu0 %209
    %211 = vrot.lane.b32.xlu0 %v202, 64
    %v212 = vpop.permute.xlu0 %211
    %vm213 = vcmask 64512
    %v215 = vsel %vm213, %v173, 0
    %v218 = vsel %vm213, %v174, 0
    %v220 = vsel %vm213, %v210, 0
    %v222 = vsel %vm213, %v212, 0
    %224 = vmatpush.xpose.msra.mxu0 0.0
    %225 = vmatpush.xpose.msra.mxu0 0.0
    %226 = vmatpush.xpose.msra.mxu0 0.0
    %227 = vmatpush.xpose.msra.mxu0 0.0
    %228 = vmatpush.xpose.msra.mxu0 0.0
    %229 = vmatpush.xpose.msra.mxu0 0.0
    %230 = vmatpush.xpose.msra.mxu0 0.0
    %231 = vmatpush.xpose.msra.mxu0 0.0
    %232 = vmatpush.xpose.msra.mxu0 0.0
    %233 = vmatpush.xpose.msra.mxu0 0.0
    %234 = vmatpush.xpose.msra.mxu0 0.0
    %235 = vmatpush.xpose.msra.mxu0 0.0
    %236 = vmatpush.xpose.msra.mxu0 0.0
    %237 = vmatpush.xpose.msra.mxu0 0.0
    %238 = vmatpush.xpose.msra.mxu0 %v222
    %239 = vmatpush.xpose.msra.mxu0 %v220
    %240 = vmatmul.f32.gmra.mxu0 %v215
    %v241 = vpop.f32.mrf.mxu0
    %v242 = vadd.f32 %v81, %v241
    %243 = vmatmul.f32.gmra.mxu0 %v218
    %v244 = vpop.f32.mrf.mxu0
    %v245 = vadd.f32 %v82, %v244
    %246 = vdwg.mxu0
    %vm247 = vcmask 130048
    %v248 = vsel %vm247, %v242, -inf
    %249 = vmax.xlane.f32.xlu0 %v248
    %v250 = vpop.xlane.xlu0 %249
    %v251 = vsel %vm247, %v245, -inf
    %252 = vmax.xlane.f32.xlu0 %v251
    %v253 = vpop.xlane.xlu0 %252
    %v254 = vsub.f32 %v242, %v250
    %v255 = vsub.f32 %v245, %v253
    %v256 = vmul.f32 %v254, 1.442695
    %v257 = vpow.pop %v256
    %v258 = vmul.f32 %v255, 1.442695
    %v259 = vpow.pop %v258
    %v260 = vsel %vm247, %v257, 0.0
    %261 = vadd.xlane.f32.xlu0 %v260
    %v262 = vpop.xlane.xlu0 %261
    %v263 = vsel %vm247, %v259, 0.0
    %264 = vadd.xlane.f32.xlu0 %v263
    %v265 = vpop.xlane.xlu0 %264
    %v266 = vrcp.pop %v262
    %v267 = vrcp.pop %v265
    %v268 = vmul.f32 %v257, %v266
    %v269 = vmul.f32 %v259, %v267
    %272 = vrot.lane.b32.xlu0 %v158, 32
    %v273 = vpop.permute.xlu0 %272
    %274 = vrot.lane.b32.xlu0 %v161, 32
    %v275 = vpop.permute.xlu0 %274
    %v279 = vsel %vm247, %v268, 0
    %v282 = vsel %vm247, %v269, 0
    %284 = vmatpush.msra.mxu0 0.0
    %285 = vmatpush.msra.mxu0 0.0
    %286 = vmatpush.msra.mxu0 0.0
    %287 = vmatpush.msra.mxu0 0.0
    %288 = vmatpush.msra.mxu0 0.0
    %289 = vmatpush.msra.mxu0 0.0
    %290 = vmatpush.msra.mxu0 0.0
    %291 = vmatpush.msra.mxu0 0.0
    %292 = vmatpush.msra.mxu0 0.0
    %293 = vmatpush.msra.mxu0 0.0
    %294 = vmatpush.msra.mxu0 0.0
    %295 = vmatpush.msra.mxu0 0.0
    %296 = vmatpush.msra.mxu0 0.0
    %297 = vmatpush.msra.mxu0 0.0
    %298 = vmatpush.msra.mxu0 %v275
    %299 = vmatpush.msra.mxu0 %v273
    %300 = vmatmul.f32.gmra.mxu0 %v279
    %v301 = vpop.f32.mrf.mxu0
    %v302 = vadd.f32 0.0, %v301
    %303 = vmatmul.f32.gmra.mxu0 %v282
    %v304 = vpop.f32.mrf.mxu0
    %v305 = vadd.f32 0.0, %v304
    %306 = vdwg.mxu0
    %307 = vrot.lane.b32.xlu0 %v173, 120
    %v308 = vpop.permute.xlu0 %307
    %309 = vrot.lane.b32.xlu0 %v174, 120
    %v310 = vpop.permute.xlu0 %309
    %v311 = vsel %vm213, %v308, 0
    %v313 = vsel %vm213, %v310, 0
    %315 = vmatpush.xpose.msra.mxu0 0.0
    %316 = vmatpush.xpose.msra.mxu0 0.0
    %317 = vmatpush.xpose.msra.mxu0 0.0
    %318 = vmatpush.xpose.msra.mxu0 0.0
    %319 = vmatpush.xpose.msra.mxu0 0.0
    %320 = vmatpush.xpose.msra.mxu0 0.0
    %321 = vmatpush.xpose.msra.mxu0 0.0
    %322 = vmatpush.xpose.msra.mxu0 0.0
    %323 = vmatpush.xpose.msra.mxu0 0.0
    %324 = vmatpush.xpose.msra.mxu0 0.0
    %325 = vmatpush.xpose.msra.mxu0 0.0
    %326 = vmatpush.xpose.msra.mxu0 0.0
    %327 = vmatpush.xpose.msra.mxu0 0.0
    %328 = vmatpush.xpose.msra.mxu0 0.0
    %329 = vmatpush.xpose.msra.mxu0 %v222
    %330 = vmatpush.xpose.msra.mxu0 %v220
    %331 = vmatmul.f32.gmra.mxu0 %v311
    %v332 = vpop.f32.mrf.mxu0
    %v333 = vadd.f32 %v81, %v332
    %334 = vmatmul.f32.gmra.mxu0 %v313
    %v335 = vpop.f32.mrf.mxu0
    %v336 = vadd.f32 %v82, %v335
    %337 = vdwg.mxu0
    %v338 = vsel %vm247, %v333, -inf
    %339 = vmax.xlane.f32.xlu0 %v338
    %v340 = vpop.xlane.xlu0 %339
    %v341 = vsel %vm247, %v336, -inf
    %342 = vmax.xlane.f32.xlu0 %v341
    %v343 = vpop.xlane.xlu0 %342
    %v344 = vsub.f32 %v333, %v340
    %v345 = vsub.f32 %v336, %v343
    %v346 = vmul.f32 %v344, 1.442695
    %v347 = vpow.pop %v346
    %v348 = vmul.f32 %v345, 1.442695
    %v349 = vpow.pop %v348
    %v350 = vsel %vm247, %v347, 0.0
    %351 = vadd.xlane.f32.xlu0 %v350
    %v352 = vpop.xlane.xlu0 %351
    %v353 = vsel %vm247, %v349, 0.0
    %354 = vadd.xlane.f32.xlu0 %v353
    %v355 = vpop.xlane.xlu0 %354
    %v356 = vrcp.pop %v352
    %v357 = vrcp.pop %v355
    %v358 = vmul.f32 %v347, %v356
    %v359 = vmul.f32 %v349, %v357
    %v361 = vsel %vm247, %v358, 0
    %v364 = vsel %vm247, %v359, 0
    %366 = vmatpush.msra.mxu0 0.0
    %367 = vmatpush.msra.mxu0 0.0
    %368 = vmatpush.msra.mxu0 0.0
    %369 = vmatpush.msra.mxu0 0.0
    %370 = vmatpush.msra.mxu0 0.0
    %371 = vmatpush.msra.mxu0 0.0
    %372 = vmatpush.msra.mxu0 0.0
    %373 = vmatpush.msra.mxu0 0.0
    %374 = vmatpush.msra.mxu0 0.0
    %375 = vmatpush.msra.mxu0 0.0
    %376 = vmatpush.msra.mxu0 0.0
    %377 = vmatpush.msra.mxu0 0.0
    %378 = vmatpush.msra.mxu0 0.0
    %379 = vmatpush.msra.mxu0 0.0
    %380 = vmatpush.msra.mxu0 %v275
    %381 = vmatpush.msra.mxu0 %v273
    %382 = vmatmul.f32.gmra.mxu0 %v361
    %v383 = vpop.f32.mrf.mxu0
    %v384 = vadd.f32 0.0, %v383
    %385 = vmatmul.f32.gmra.mxu0 %v364
    %v386 = vpop.f32.mrf.mxu0
    %v387 = vadd.f32 0.0, %v386
    %388 = vdwg.mxu0
    %v390 = vsel %vm213, %v384, 0
    %v393 = vsel %vm213, %v387, 0
    %395 = vmatpush.msra.mxu0 0.0
    %396 = vmatpush.msra.mxu0 0.0
    %397 = vmatpush.msra.mxu0 0.0
    %398 = vmatpush.msra.mxu0 0.0
    %399 = vmatpush.msra.mxu0 0.0
    %400 = vmatpush.msra.mxu0 0.0
    %401 = vmatpush.msra.mxu0 0.0
    %402 = vmatpush.msra.mxu0 0.0
    %403 = vmatpush.msra.mxu0 0.0
    %404 = vmatpush.msra.mxu0 0.0
    %405 = vmatpush.msra.mxu0 0.0
    %406 = vmatpush.msra.mxu0 0.0
    %407 = vmatpush.msra.mxu0 0.0
    %408 = vmatpush.msra.mxu0 0.0
    %409 = vmatpush.msra.mxu0 0.0
    %410 = vmatpush.msra.mxu0 %v204
    %411 = vmatmul.f32.gmra.mxu0 %v390
    %v412 = vpop.f32.mrf.mxu0
    %v413 = vadd.f32 0.0, %v412
    %414 = vmatmul.f32.gmra.mxu0 %v393
    %v415 = vpop.f32.mrf.mxu0
    %v416 = vadd.f32 0.0, %v415
    %417 = vdwg.mxu0
    %v419 = vsel %vm213, %v302, 0
    %v422 = vsel %vm213, %v305, 0
    %424 = vmatpush.msra.mxu0 0.0
    %425 = vmatpush.msra.mxu0 0.0
    %426 = vmatpush.msra.mxu0 0.0
    %427 = vmatpush.msra.mxu0 0.0
    %428 = vmatpush.msra.mxu0 0.0
    %429 = vmatpush.msra.mxu0 0.0
    %430 = vmatpush.msra.mxu0 0.0
    %431 = vmatpush.msra.mxu0 0.0
    %432 = vmatpush.msra.mxu0 0.0
    %433 = vmatpush.msra.mxu0 0.0
    %434 = vmatpush.msra.mxu0 0.0
    %435 = vmatpush.msra.mxu0 0.0
    %436 = vmatpush.msra.mxu0 0.0
    %437 = vmatpush.msra.mxu0 0.0
    %438 = vmatpush.msra.mxu0 0.0
    %439 = vmatpush.msra.mxu0 %v203
    %440 = vmatmul.f32.gmra.mxu0 %v419
    %v441 = vpop.f32.mrf.mxu0
    %v442 = vadd.f32 %v413, %v441
    %443 = vmatmul.f32.gmra.mxu0 %v422
    %v444 = vpop.f32.mrf.mxu0
    %v445 = vadd.f32 %v416, %v444
    %446 = vdwg.mxu0
    %447 = vrot.lane.b32.xlu0 %v173, 112
    %v448 = vpop.permute.xlu0 %447
    %449 = vrot.lane.b32.xlu0 %v174, 112
    %v450 = vpop.permute.xlu0 %449
    %451 = vrot.lane.b32.xlu0 %v201, 56
    %v452 = vpop.permute.xlu0 %451
    %453 = vrot.lane.b32.xlu0 %v202, 56
    %v454 = vpop.permute.xlu0 %453
    %v455 = vsel %vm213, %v448, 0
    %v457 = vsel %vm213, %v450, 0
    %v459 = vsel %vm213, %v452, 0
    %v461 = vsel %vm213, %v454, 0
    %463 = vmatpush.xpose.msra.mxu0 0.0
    %464 = vmatpush.xpose.msra.mxu0 0.0
    %465 = vmatpush.xpose.msra.mxu0 0.0
    %466 = vmatpush.xpose.msra.mxu0 0.0
    %467 = vmatpush.xpose.msra.mxu0 0.0
    %468 = vmatpush.xpose.msra.mxu0 0.0
    %469 = vmatpush.xpose.msra.mxu0 0.0
    %470 = vmatpush.xpose.msra.mxu0 0.0
    %471 = vmatpush.xpose.msra.mxu0 0.0
    %472 = vmatpush.xpose.msra.mxu0 0.0
    %473 = vmatpush.xpose.msra.mxu0 0.0
    %474 = vmatpush.xpose.msra.mxu0 0.0
    %475 = vmatpush.xpose.msra.mxu0 0.0
    %476 = vmatpush.xpose.msra.mxu0 0.0
    %477 = vmatpush.xpose.msra.mxu0 %v461
    %478 = vmatpush.xpose.msra.mxu0 %v459
    %479 = vmatmul.f32.gmra.mxu0 %v455
    %v480 = vpop.f32.mrf.mxu0
    %v481 = vadd.f32 %v81, %v480
    %482 = vmatmul.f32.gmra.mxu0 %v457
    %v483 = vpop.f32.mrf.mxu0
    %v484 = vadd.f32 %v82, %v483
    %485 = vdwg.mxu0
    %v486 = vsel %vm247, %v481, -inf
    %487 = vmax.xlane.f32.xlu0 %v486
    %v488 = vpop.xlane.xlu0 %487
    %v489 = vsel %vm247, %v484, -inf
    %490 = vmax.xlane.f32.xlu0 %v489
    %v491 = vpop.xlane.xlu0 %490
    %v492 = vsub.f32 %v481, %v488
    %v493 = vsub.f32 %v484, %v491
    %v494 = vmul.f32 %v492, 1.442695
    %v495 = vpow.pop %v494
    %v496 = vmul.f32 %v493, 1.442695
    %v497 = vpow.pop %v496
    %v498 = vsel %vm247, %v495, 0.0
    %499 = vadd.xlane.f32.xlu0 %v498
    %v500 = vpop.xlane.xlu0 %499
    %v501 = vsel %vm247, %v497, 0.0
    %502 = vadd.xlane.f32.xlu0 %v501
    %v503 = vpop.xlane.xlu0 %502
    %v504 = vrcp.pop %v500
    %v505 = vrcp.pop %v503
    %v506 = vmul.f32 %v495, %v504
    %v507 = vmul.f32 %v497, %v505
    %508 = vrot.lane.b32.xlu0 %v158, 24
    %v509 = vpop.permute.xlu0 %508
    %510 = vrot.lane.b32.xlu0 %v161, 24
    %v511 = vpop.permute.xlu0 %510
    %v515 = vsel %vm247, %v506, 0
    %v518 = vsel %vm247, %v507, 0
    %520 = vmatpush.msra.mxu0 0.0
    %521 = vmatpush.msra.mxu0 0.0
    %522 = vmatpush.msra.mxu0 0.0
    %523 = vmatpush.msra.mxu0 0.0
    %524 = vmatpush.msra.mxu0 0.0
    %525 = vmatpush.msra.mxu0 0.0
    %526 = vmatpush.msra.mxu0 0.0
    %527 = vmatpush.msra.mxu0 0.0
    %528 = vmatpush.msra.mxu0 0.0
    %529 = vmatpush.msra.mxu0 0.0
    %530 = vmatpush.msra.mxu0 0.0
    %531 = vmatpush.msra.mxu0 0.0
    %532 = vmatpush.msra.mxu0 0.0
    %533 = vmatpush.msra.mxu0 0.0
    %534 = vmatpush.msra.mxu0 %v511
    %535 = vmatpush.msra.mxu0 %v509
    %536 = vmatmul.f32.gmra.mxu0 %v515
    %v537 = vpop.f32.mrf.mxu0
    %v538 = vadd.f32 0.0, %v537
    %539 = vmatmul.f32.gmra.mxu0 %v518
    %v540 = vpop.f32.mrf.mxu0
    %v541 = vadd.f32 0.0, %v540
    %542 = vdwg.mxu0
    %v544 = vsel %vm213, %v538, 0
    %v547 = vsel %vm213, %v541, 0
    %549 = vmatpush.msra.mxu0 0.0
    %550 = vmatpush.msra.mxu0 0.0
    %551 = vmatpush.msra.mxu0 0.0
    %552 = vmatpush.msra.mxu0 0.0
    %553 = vmatpush.msra.mxu0 0.0
    %554 = vmatpush.msra.mxu0 0.0
    %555 = vmatpush.msra.mxu0 0.0
    %556 = vmatpush.msra.mxu0 0.0
    %557 = vmatpush.msra.mxu0 0.0
    %558 = vmatpush.msra.mxu0 0.0
    %559 = vmatpush.msra.mxu0 0.0
    %560 = vmatpush.msra.mxu0 0.0
    %561 = vmatpush.msra.mxu0 0.0
    %562 = vmatpush.msra.mxu0 0.0
    %563 = vmatpush.msra.mxu0 0.0
    %564 = vmatpush.msra.mxu0 %v205
    %565 = vmatmul.f32.gmra.mxu0 %v544
    %v566 = vpop.f32.mrf.mxu0
    %v567 = vadd.f32 0.0, %v566
    %568 = vmatmul.f32.gmra.mxu0 %v547
    %v569 = vpop.f32.mrf.mxu0
    %v570 = vadd.f32 0.0, %v569
    %571 = vdwg.mxu0
    %v572 = vadd.f32 %v442, %v567
    %v573 = vadd.f32 %v445, %v570
    %574 = vrot.lane.b32.xlu0 %v173, 104
    %v575 = vpop.permute.xlu0 %574
    %576 = vrot.lane.b32.xlu0 %v174, 104
    %v577 = vpop.permute.xlu0 %576
    %v578 = vsel %vm213, %v575, 0
    %v580 = vsel %vm213, %v577, 0
    %582 = vmatpush.xpose.msra.mxu0 0.0
    %583 = vmatpush.xpose.msra.mxu0 0.0
    %584 = vmatpush.xpose.msra.mxu0 0.0
    %585 = vmatpush.xpose.msra.mxu0 0.0
    %586 = vmatpush.xpose.msra.mxu0 0.0
    %587 = vmatpush.xpose.msra.mxu0 0.0
    %588 = vmatpush.xpose.msra.mxu0 0.0
    %589 = vmatpush.xpose.msra.mxu0 0.0
    %590 = vmatpush.xpose.msra.mxu0 0.0
    %591 = vmatpush.xpose.msra.mxu0 0.0
    %592 = vmatpush.xpose.msra.mxu0 0.0
    %593 = vmatpush.xpose.msra.mxu0 0.0
    %594 = vmatpush.xpose.msra.mxu0 0.0
    %595 = vmatpush.xpose.msra.mxu0 0.0
    %596 = vmatpush.xpose.msra.mxu0 %v461
    %597 = vmatpush.xpose.msra.mxu0 %v459
    %598 = vmatmul.f32.gmra.mxu0 %v578
    %v599 = vpop.f32.mrf.mxu0
    %v600 = vadd.f32 %v81, %v599
    %601 = vmatmul.f32.gmra.mxu0 %v580
    %v602 = vpop.f32.mrf.mxu0
    %v603 = vadd.f32 %v82, %v602
    %604 = vdwg.mxu0
    %v605 = vsel %vm247, %v600, -inf
    %606 = vmax.xlane.f32.xlu0 %v605
    %v607 = vpop.xlane.xlu0 %606
    %v608 = vsel %vm247, %v603, -inf
    %609 = vmax.xlane.f32.xlu0 %v608
    %v610 = vpop.xlane.xlu0 %609
    %v611 = vsub.f32 %v600, %v607
    %v612 = vsub.f32 %v603, %v610
    %v613 = vmul.f32 %v611, 1.442695
    %v614 = vpow.pop %v613
    %v615 = vmul.f32 %v612, 1.442695
    %v616 = vpow.pop %v615
    %v617 = vsel %vm247, %v614, 0.0
    %618 = vadd.xlane.f32.xlu0 %v617
    %v619 = vpop.xlane.xlu0 %618
    %v620 = vsel %vm247, %v616, 0.0
    %621 = vadd.xlane.f32.xlu0 %v620
    %v622 = vpop.xlane.xlu0 %621
    %v623 = vrcp.pop %v619
    %v624 = vrcp.pop %v622
    %v625 = vmul.f32 %v614, %v623
    %v626 = vmul.f32 %v616, %v624
    %v628 = vsel %vm247, %v625, 0
    %v631 = vsel %vm247, %v626, 0
    %633 = vmatpush.msra.mxu0 0.0
    %634 = vmatpush.msra.mxu0 0.0
    %635 = vmatpush.msra.mxu0 0.0
    %636 = vmatpush.msra.mxu0 0.0
    %637 = vmatpush.msra.mxu0 0.0
    %638 = vmatpush.msra.mxu0 0.0
    %639 = vmatpush.msra.mxu0 0.0
    %640 = vmatpush.msra.mxu0 0.0
    %641 = vmatpush.msra.mxu0 0.0
    %642 = vmatpush.msra.mxu0 0.0
    %643 = vmatpush.msra.mxu0 0.0
    %644 = vmatpush.msra.mxu0 0.0
    %645 = vmatpush.msra.mxu0 0.0
    %646 = vmatpush.msra.mxu0 0.0
    %647 = vmatpush.msra.mxu0 %v511
    %648 = vmatpush.msra.mxu0 %v509
    %649 = vmatmul.f32.gmra.mxu0 %v628
    %v650 = vpop.f32.mrf.mxu0
    %v651 = vadd.f32 0.0, %v650
    %652 = vmatmul.f32.gmra.mxu0 %v631
    %v653 = vpop.f32.mrf.mxu0
    %v654 = vadd.f32 0.0, %v653
    %655 = vdwg.mxu0
    %v657 = vsel %vm213, %v651, 0
    %v660 = vsel %vm213, %v654, 0
    %662 = vmatpush.msra.mxu0 0.0
    %663 = vmatpush.msra.mxu0 0.0
    %664 = vmatpush.msra.mxu0 0.0
    %665 = vmatpush.msra.mxu0 0.0
    %666 = vmatpush.msra.mxu0 0.0
    %667 = vmatpush.msra.mxu0 0.0
    %668 = vmatpush.msra.mxu0 0.0
    %669 = vmatpush.msra.mxu0 0.0
    %670 = vmatpush.msra.mxu0 0.0
    %671 = vmatpush.msra.mxu0 0.0
    %672 = vmatpush.msra.mxu0 0.0
    %673 = vmatpush.msra.mxu0 0.0
    %674 = vmatpush.msra.mxu0 0.0
    %675 = vmatpush.msra.mxu0 0.0
    %676 = vmatpush.msra.mxu0 0.0
    %677 = vmatpush.msra.mxu0 %v206
    %678 = vmatmul.f32.gmra.mxu0 %v657
    %v679 = vpop.f32.mrf.mxu0
    %v680 = vadd.f32 0.0, %v679
    %681 = vmatmul.f32.gmra.mxu0 %v660
    %v682 = vpop.f32.mrf.mxu0
    %v683 = vadd.f32 0.0, %v682
    %684 = vdwg.mxu0
    %v685 = vadd.f32 %v572, %v680
    %v686 = vadd.f32 %v573, %v683
    %v687 = vadd.f32 %v77, %v685
    %v688 = vadd.f32 %v78, %v686
    %v689 = vmul.f32 %v687, %v687
    %v690 = vmul.f32 %v688, %v688
    %v691 = vsel %vm87, %v689, 0.0
    %692 = vadd.xlane.f32.xlu0 %v691
    %v693 = vpop.xlane.xlu0 %692
    %v694 = vsel %vm87, %v690, 0.0
    %695 = vadd.xlane.f32.xlu0 %v694
    %v696 = vpop.xlane.xlu0 %695
    %v697 = vmul.f32 %v693, %v100
    %v698 = vmul.f32 %v696, %v100
    %v699 = vadd.f32 %v697, 1e-06
    %v700 = vadd.f32 %v698, 1e-06
    %v701 = vrsqrt.pop %v699
    %v702 = vmul.f32 %v701, %v699
    %v703 = vmul.f32 %v702, %v701
    %v704 = vmul.f32 0.5, %v703
    %v705 = vsub.f32 1.5, %v704
    %v706 = vmul.f32 %v701, %v705
    %vm707 = vweird.f32 %v699
    %vm708 = vweird.f32 %v701
    %vm709 = vmor %vm707, %vm708
    %v710 = vsel %vm709, %v701, %v706
    %v711 = vrsqrt.pop %v700
    %v712 = vmul.f32 %v711, %v700
    %v713 = vmul.f32 %v712, %v711
    %v714 = vmul.f32 0.5, %v713
    %v715 = vsub.f32 1.5, %v714
    %v716 = vmul.f32 %v711, %v715
    %vm717 = vweird.f32 %v700
    %vm718 = vweird.f32 %v711
    %vm719 = vmor %vm717, %vm718
    %v720 = vsel %vm719, %v711, %v716
    %v721 = vmul.f32 %v687, %v710
    %v722 = vmul.f32 %v688, %v720
    %v723 = vperm.slane %v84, 0
    %v724 = vmul.f32 %v721, %v723
    %v725 = vmul.f32 %v722, %v723
    %v726 = vld [vmem:[%s3] sm:$0xff]
    %v727 = vld [vmem:[%s3 + $0x8] sm:$0xff]
    %v728 = vld [vmem:[%s3 + $0x10] sm:$0xff]
    %v729 = vld [vmem:[%s3 + $0x18] sm:$0xff]
    %v731 = vsel %vm87, %v724, 0
    %v734 = vsel %vm87, %v725, 0
    %736 = vmatpush.msra.mxu0 0.0
    %737 = vmatpush.msra.mxu0 0.0
    %738 = vmatpush.msra.mxu0 0.0
    %739 = vmatpush.msra.mxu0 0.0
    %740 = vmatpush.msra.mxu0 0.0
    %741 = vmatpush.msra.mxu0 0.0
    %742 = vmatpush.msra.mxu0 0.0
    %743 = vmatpush.msra.mxu0 0.0
    %744 = vmatpush.msra.mxu0 0.0
    %745 = vmatpush.msra.mxu0 0.0
    %746 = vmatpush.msra.mxu0 0.0
    %747 = vmatpush.msra.mxu0 0.0
    %748 = vmatpush.msra.mxu0 %v729
    %749 = vmatpush.msra.mxu0 %v728
    %750 = vmatpush.msra.mxu0 %v727
    %751 = vmatpush.msra.mxu0 %v726
    %752 = vmatmul.f32.gmra.mxu0 %v731
    %v753 = vpop.f32.mrf.mxu0
    %v754 = vadd.f32 0.0, %v753
    %755 = vmatmul.f32.gmra.mxu0 %v734
    %v756 = vpop.f32.mrf.mxu0
    %v757 = vadd.f32 0.0, %v756
    %758 = vdwg.mxu0
    %v759 = vxor.u32 %v754, 2147483648
    %v760 = vxor.u32 %v757, 2147483648
    %v761 = vmul.f32 %v759, 1.442695
    %v762 = vpow.pop %v761
    %v763 = vmul.f32 %v760, 1.442695
    %v764 = vpow.pop %v763
    %v765 = vadd.f32 %v762, 1.0
    %v766 = vadd.f32 %v764, 1.0
    %v767 = vrcp.pop %v765
    %v768 = vmul.f32 %v765, %v767
    %v769 = vsub.f32 1.0, %v768
    %v770 = vmul.f32 %v767, %v769
    %v771 = vadd.f32 %v767, %v770
    %vm772 = vweird.f32 %v765
    %vm773 = vweird.f32 %v767
    %vm774 = vmor %vm772, %vm773
    %v775 = vsel %vm774, %v767, %v771
    %v776 = vand.u32 2147483647, %v765
    %vm777 = vcmp.eq.f32.partialorder %v776, 8.507059e+37
    %v778 = vand.u32 %v765, 2147483648
    %v779 = vor.u32 1.1754944e-38, %v778
    %v780 = vsel %vm777, %v779, %v775
    %v781 = vmul.f32 1.0, %v780
    %v782 = vrcp.pop %v766
    %v783 = vmul.f32 %v766, %v782
    %v784 = vsub.f32 1.0, %v783
    %v785 = vmul.f32 %v782, %v784
    %v786 = vadd.f32 %v782, %v785
    %vm787 = vweird.f32 %v766
    %vm788 = vweird.f32 %v782
    %vm789 = vmor %vm787, %vm788
    %v790 = vsel %vm789, %v782, %v786
    %v791 = vand.u32 2147483647, %v766
    %vm792 = vcmp.eq.f32.partialorder %v791, 8.507059e+37
    %v793 = vand.u32 %v766, 2147483648
    %v794 = vor.u32 1.1754944e-38, %v793
    %v795 = vsel %vm792, %v794, %v790
    %v796 = vmul.f32 1.0, %v795
    %v797 = vmul.f32 %v754, %v781
    %v798 = vmul.f32 %v757, %v796
    %801 = vrot.lane.b32.xlu0 %v754, 64
    %v802 = vpop.permute.xlu0 %801
    %803 = vrot.lane.b32.xlu0 %v757, 64
    %v804 = vpop.permute.xlu0 %803
    %v807 = vmul.f32 %v797, %v802
    %v808 = vmul.f32 %v798, %v804
    %v809 = vld [vmem:[%s4] sm:$0xff]
    %v810 = vld [vmem:[%s4 + $0x8] sm:$0xff]
    %v811 = vld [vmem:[%s4 + $0x10] sm:$0xff]
    %v812 = vld [vmem:[%s4 + $0x18] sm:$0xff]
    %v813 = vld [vmem:[%s4 + $0x20] sm:$0xff]
    %v814 = vld [vmem:[%s4 + $0x28] sm:$0xff]
    %v815 = vld [vmem:[%s4 + $0x30] sm:$0xff]
    %v816 = vld [vmem:[%s4 + $0x38] sm:$0xff]
    %vm817 = vcmask 523264
    %v819 = vsel %vm817, %v807, 0
    %v822 = vsel %vm817, %v808, 0
    %824 = vmatpush.msra.mxu0 0.0
    %825 = vmatpush.msra.mxu0 0.0
    %826 = vmatpush.msra.mxu0 0.0
    %827 = vmatpush.msra.mxu0 0.0
    %828 = vmatpush.msra.mxu0 0.0
    %829 = vmatpush.msra.mxu0 0.0
    %830 = vmatpush.msra.mxu0 0.0
    %831 = vmatpush.msra.mxu0 0.0
    %832 = vmatpush.msra.mxu0 %v816
    %833 = vmatpush.msra.mxu0 %v815
    %834 = vmatpush.msra.mxu0 %v814
    %835 = vmatpush.msra.mxu0 %v813
    %836 = vmatpush.msra.mxu0 %v812
    %837 = vmatpush.msra.mxu0 %v811
    %838 = vmatpush.msra.mxu0 %v810
    %839 = vmatpush.msra.mxu0 %v809
    %840 = vmatmul.f32.gmra.mxu0 %v819
    %v841 = vpop.f32.mrf.mxu0
    %v842 = vadd.f32 0.0, %v841
    %843 = vmatmul.f32.gmra.mxu0 %v822
    %v844 = vpop.f32.mrf.mxu0
    %v845 = vadd.f32 0.0, %v844
    %846 = vdwg.mxu0
    %v847 = vadd.f32 %v687, %v842
    %v848 = vadd.f32 %v688, %v845
    %849 = vst.msk [vmem:[#allocation8] sm:$0xff] %vm87, %v847
    %850 = vst.msk [vmem:[#allocation8 + $0x8] sm:$0xff] %vm87, %v848
    // Predicated region
    $region46: #{tpu_custom_call.1} parent=1 // pred_check
      _
    $region47: #{tpu_custom_call.1} parent=1 // pred_check_branch
      %852 = sbr.rel (0) target = $region49
    $region48: #{tpu_custom_call.1} parent=1 // pred_region
      %854 = vsyncadd [#allocation4], 0
      %s855 = sshll.u32 [#allocation8], 4
      %s856 = int_to_ptr.vmem [resolvable:$true] %s855
      %s857 = sshll.u32 %s8, 4
      %s858 = int_to_ptr.hbm [resolvable:$true] %s857
      %863 = dma.vmem_to_hbm [thread:$0]  %s856, 256, %s858, [#allocation4], 128, 128, 8
    $region49: #{tpu_custom_call.1} parent=1 // pred_fallthru
      _
    // Predicated region
    $region50: #{tpu_custom_call.1} parent=1 // pred_check
      _
    $region51: #{tpu_custom_call.1} parent=1 // pred_check_branch
      %865 = sbr.rel (0) target = $region53
    $region52: #{tpu_custom_call.1} parent=1 // pred_region
      %867 = dma.done [#allocation4], 256
    $region53: #{tpu_custom_call.1} parent=1 // pred_fallthru
      _
    %868 = vsyncpa [#allocation3], 1
    %869 = vsyncpa [#allocation6], 1
    %870 = vsyncpa [#allocation4], 1

</llo_original>
